<compile_context>
chip_gen: v6e
topology: v6e:2x2x1
jax: 0.10.0
libtpu: 0.0.40
codegen_flags: <defaults>
</compile_context>

<pallas_src>
import functools

import jax
import jax.numpy as jnp
from jax.experimental import pallas as pl
from jax.experimental.pallas import tpu as pltpu

EPS = 1e-5   # nn.InstanceNorm2d default eps (biased variance)
PAD = 1      # assumed pad_num
DIL = 1      # assumed dil_num


def _shift_geom(W, HW):
    """Guard width, lane-aligned data offset and total length of the flat
    shift buffer used for the 3x3 taps (pad = dil = 1)."""
    ms = W + 1                               # max |flat shift| of a tap
    doff = ((ms + 127) // 128) * 128         # lane-aligned start of data region
    return ms, doff, doff + HW + ms


# ----------------------------------------------------------------------------
# Fused kernel: IN + ReLU + 1x1 conv + IN + ReLU + 3x3 conv + channel concat
# ----------------------------------------------------------------------------
def _bottleneck_kernel(x_ref, w1_ref, w2_ref, o_ref, pbuf_ref,
                       *, H, W, Cin, Ci, Co, Bblk):
    # Channel-major layout: channels on sublanes, flattened HW on lanes.
    #   x_ref:    (Bblk, Cin, HW)      raw input (pure reshape of NCHW)
    #   w1_ref:   (Ci, Cin)            1x1 conv weight (transposed)
    #   w2_ref:   (9*Co, Ci)           3x3 conv weight, row = (kh*3+kw)*Co + co
    #   o_ref:    (Bblk, Cin+Co, HW)   fused cat([x, conv2(...)], channel dim)
    #   pbuf_ref: VMEM (9*Co, LP)      per-tap partials + zero guard bands
    HW = H * W
    inv_hw = 1.0 / float(HW)
    MS, DOFF, _ = _shift_geom(W, HW)

    # Column-validity masks (output-position dependent; shared by taps/samples).
    w_idx = jax.lax.broadcasted_iota(jnp.int32, (1, HW), 1) % W
    mask_l = w_idx >= 1          # source col w-1 is valid  (taps with kw == 0)
    mask_r = w_idx <= W - 2      # source col w+1 is valid  (taps with kw == 2)

    # Halo-only zeroing: guard bands are never overwritten by the data store.
    guard = jnp.zeros((9 * Co, MS), jnp.float32)
    pbuf_ref[:, DOFF - MS:DOFF] = guard
    pbuf_ref[:, DOFF + HW:DOFF + HW + MS] = guard

    w1t = w1_ref[...]            # (Ci, Cin)
    w2r = w2_ref[...]            # (9*Co, Ci)

    for b in range(Bblk):        # static unroll; Bblk>1 folds samples per step
        x = x_ref[b]             # (Cin, HW)

        # ---- stage 1: InstanceNorm + ReLU (two-pass var) + 1x1 conv --------
        mean = jnp.sum(x, axis=1, keepdims=True) * inv_hw          # (Cin, 1)
        xc = x - mean
        var = jnp.sum(xc * xc, axis=1, keepdims=True) * inv_hw
        xr = jnp.maximum(xc * jax.lax.rsqrt(var + EPS), 0.0)       # (Cin, HW)
        # K=Cin=4 matmul, but N=HW=256 fills the lanes (C-major flip).
        t = jnp.dot(w1t, xr, preferred_element_type=jnp.float32)   # (Ci, HW)

        # ---- stage 2: InstanceNorm + ReLU -----------------------------------
        mt = jnp.sum(t, axis=1, keepdims=True) * inv_hw            # (Ci, 1)
        tc = t - mt
        vt = jnp.sum(tc * tc, axis=1, keepdims=True) * inv_hw
        tr = jnp.maximum(tc * jax.lax.rsqrt(vt + EPS), 0.0)        # (Ci, HW)

        # ---- stage 2: 3x3 conv (pad=dil=1) -----------------------------------
        # One MXU matmul over all 9 taps, then 9 cheap shift-and-add passes on
        # (Co, HW) partials instead of an im2col buffer.
        p_all = jnp.dot(w2r, tr, preferred_element_type=jnp.float32)  # (9Co, HW)
        pbuf_ref[:, DOFF:DOFF + HW] = p_all        # 128-lane-aligned store

        acc = jnp.zeros((Co, HW), jnp.float32)
        for kh in range(3):
            for kw in range(3):
                tap = kh * 3 + kw
                d = (kh - 1) * W + (kw - 1)        # flat source shift
                term = pbuf_ref[tap * Co:(tap + 1) * Co,
                                DOFF + d:DOFF + d + HW]             # (Co, HW)
                if kw == 0:
                    term = jnp.where(mask_l, term, 0.0)
                elif kw == 2:
                    term = jnp.where(mask_r, term, 0.0)
                acc = acc + term

        # ---- fused concat([x, out], channel dim); lane-dense (HW) stores ----
        o_ref[b, 0:Cin, :] = x
        o_ref[b, Cin:Cin + Co, :] = acc.astype(o_ref.dtype)


# ----------------------------------------------------------------------------
# Wrapper (NCHW in / NCHW out, like the PyTorch module)
# ----------------------------------------------------------------------------
def bottleneck_block(x_nchw, w1, w2_hwio, *, samples_per_block=1):
    """x_nchw: (B, Cin, H, W); w1: (Cin, Cinter); w2_hwio: (3, 3, Cinter, Co)."""
    B, Cin, H, W = x_nchw.shape
    Ci = w1.shape[1]
    Co = w2_hwio.shape[-1]
    HW = H * W
    assert B % samples_per_block == 0
    _, _, LP = _shift_geom(W, HW)

    x32 = x_nchw.astype(jnp.float32)
    x_flat = x32.reshape(B, Cin, HW)                              # pure reshape
    w1t = jnp.transpose(w1.astype(jnp.float32))                   # (Ci, Cin)
    w2r = jnp.transpose(w2_hwio.astype(jnp.float32),
                        (0, 1, 3, 2)).reshape(9 * Co, Ci)         # (9Co, Ci)

    bb = samples_per_block
    out_flat = pl.pallas_call(
        functools.partial(_bottleneck_kernel,
                          H=H, W=W, Cin=Cin, Ci=Ci, Co=Co, Bblk=bb),
        out_shape=jax.ShapeDtypeStruct((B, Cin + Co, HW), jnp.float32),
        grid=(B // bb,),
        in_specs=[
            pl.BlockSpec((bb, Cin, HW), lambda g: (g, 0, 0)),
            pl.BlockSpec((Ci, Cin), lambda g: (0, 0)),
            pl.BlockSpec((9 * Co, Ci), lambda g: (0, 0)),
        ],
        out_specs=pl.BlockSpec((bb, Cin + Co, HW), lambda g: (g, 0, 0)),
        scratch_shapes=[pltpu.VMEM((9 * Co, LP), jnp.float32)],
        compiler_params=pltpu.CompilerParams(
            # On v7x use pltpu.CORE_PARALLEL here to shard batch across both TCs.
            dimension_semantics=("parallel",),
            vmem_limit_bytes=32 * 1024 * 1024),
    )(x_flat, w1t, w2r)

    return out_flat.reshape(B, Cin + Co, H, W)                    # pure reshape


# ----------------------------------------------------------------------------
# Pure-JAX reference (for a correctness check)
# ----------------------------------------------------------------------------
def bottleneck_block_ref(x_nchw, w1, w2_hwio):
    def inorm(v):  # (B, C, H, W), biased var, eps=1e-5
        m = jnp.mean(v, axis=(2, 3), keepdims=True)
        var = jnp.var(v, axis=(2, 3), keepdims=True)
        return (v - m) / jnp.sqrt(var + EPS)

    h = jnp.maximum(inorm(x_nchw.astype(jnp.float32)), 0.0)
    t = jnp.einsum("bchw,cd->bdhw", h, w1.astype(jnp.float32))
    h2 = jnp.maximum(inorm(t), 0.0)
    out = jax.lax.conv_general_dilated(
        h2, w2_hwio.astype(jnp.float32),
        window_strides=(1, 1),
        padding=((PAD, PAD), (PAD, PAD)),
        rhs_dilation=(DIL, DIL),
        dimension_numbers=("NCHW", "HWIO", "NCHW"))
    return jnp.concatenate([x_nchw.astype(jnp.float32), out], axis=1)


if __name__ == "__main__":
    # Small, module-consistent shapes.
    B, Cin, H, W = 2, 4, 16, 16
    out_planes = 8
    Cinter = out_planes * 4  # 32

    key = jax.random.PRNGKey(0)
    kx, k1, k2 = jax.random.split(key, 3)
    x = jax.random.normal(kx, (B, Cin, H, W), dtype=jnp.float32)
    # Deterministic synthetic weights (bias-free convs, as in the module).
    w1 = 0.1 * jax.random.normal(k1, (Cin, Cinter), dtype=jnp.float32)         # 1x1
    w2 = 0.1 * jax.random.normal(k2, (3, 3, Cinter, out_planes), jnp.float32)  # 3x3 HWIO

    y = bottleneck_block(x, w1, w2)
    y = jax.block_until_ready(y)

    y_ref = bottleneck_block_ref(x, w1, w2)
    assert y.shape == (B, Cin + out_planes, H, W), y.shape
    assert jnp.allclose(y, y_ref, atol=1e-3, rtol=1e-3), (
        float(jnp.max(jnp.abs(y - y_ref))))

    print("KERNEL_OK")
</pallas_src>

<mosaic_0001>
module attributes {stable_mosaic.version = 11 : i64} {
  func.func @_bottleneck_kernel(%arg0: i32, %arg1: memref<1x4x256xf32, #tpu.memory_space<vmem>>, %arg2: memref<32x4xf32, #tpu.memory_space<vmem>>, %arg3: memref<72x32xf32, #tpu.memory_space<vmem>>, %arg4: memref<1x12x256xf32, #tpu.memory_space<vmem>>, %arg5: memref<72x401xf32, #tpu.memory_space<vmem>>) attributes {dimension_semantics = [#tpu.dimension_semantics<parallel>], iteration_bounds = array<i64: 2>, scalar_prefetch = 0 : i64, scratch_operands = 1 : i64, tpu.core_type = #tpu.core_type<tc>, window_params = [{transform_indices = @transform_0, window_bounds = array<i64: 1, 4, 256>}, {pipeline_mode = #tpu.pipeline_mode<synchronous>, transform_indices = @transform_1, window_bounds = array<i64: 32, 4>}, {pipeline_mode = #tpu.pipeline_mode<synchronous>, transform_indices = @transform_2, window_bounds = array<i64: 72, 32>}, {transform_indices = @transform_3, window_bounds = array<i64: 1, 12, 256>}]} {
    %0 = tpu.iota {dimensions = array<i32: 1>} : vector<1x256xi32>
    %c16_i32 = arith.constant 16 : i32
    %c0_i32 = arith.constant 0 : i32
    %1 = arith.cmpi eq, %c16_i32, %c0_i32 : i32
    %c1_i32 = arith.constant 1 : i32
    %2 = arith.select %1, %c1_i32, %c16_i32 : i32
    %3 = vector.broadcast %2 : i32 to vector<1x256xi32>
    %4 = arith.remsi %0, %3 : vector<1x256xi32>
    %c0_i32_0 = arith.constant 0 : i32
    %5 = vector.broadcast %c0_i32_0 : i32 to vector<1x256xi32>
    %6 = arith.cmpi ne, %4, %5 : vector<1x256xi32>
    %c0_i32_1 = arith.constant 0 : i32
    %7 = vector.broadcast %c0_i32_1 : i32 to vector<1x256xi32>
    %8 = arith.cmpi slt, %4, %7 : vector<1x256xi32>
    %c0_i32_2 = arith.constant 0 : i32
    %9 = arith.cmpi slt, %2, %c0_i32_2 : i32
    %10 = vector.broadcast %9 : i1 to vector<1x256xi1>
    %11 = vector.broadcast %10 : vector<1x256xi1> to vector<1x256xi1>
    %12 = arith.xori %8, %11 : vector<1x256xi1>
    %13 = arith.andi %12, %6 : vector<1x256xi1>
    %14 = vector.broadcast %2 : i32 to vector<1x256xi32>
    %15 = arith.addi %4, %14 : vector<1x256xi32>
    %16 = arith.select %13, %15, %4 : vector<1x256xi1>, vector<1x256xi32>
    %c1_i32_3 = arith.constant 1 : i32
    %17 = vector.broadcast %c1_i32_3 : i32 to vector<1x256xi32>
    %18 = arith.cmpi sge, %16, %17 : vector<1x256xi32>
    %c14_i32 = arith.constant 14 : i32
    %19 = vector.broadcast %c14_i32 : i32 to vector<1x256xi32>
    %20 = arith.cmpi sle, %16, %19 : vector<1x256xi32>
    %cst = arith.constant 0.000000e+00 : f32
    %21 = vector.broadcast %cst : f32 to vector<72x17xf32>
    %c0 = arith.constant 0 : index
    %c111 = arith.constant 111 : index
    %22 = vector.load %arg5[%c0, %c111] : memref<72x401xf32, #tpu.memory_space<vmem>>, vector<72x17xf32>
    tpu.vector_store %arg5[%c0, %c111], %21 {strides = array<i32>} : memref<72x401xf32, #tpu.memory_space<vmem>>, vector<72x17xf32>,
    %c0_4 = arith.constant 0 : index
    %c384 = arith.constant 384 : index
    %23 = vector.load %arg5[%c0_4, %c384] : memref<72x401xf32, #tpu.memory_space<vmem>>, vector<72x17xf32>
    tpu.vector_store %arg5[%c0_4, %c384], %21 {strides = array<i32>} : memref<72x401xf32, #tpu.memory_space<vmem>>, vector<72x17xf32>,
    %c0_5 = arith.constant 0 : index
    %c0_6 = arith.constant 0 : index
    %24 = vector.load %arg2[%c0_5, %c0_6] : memref<32x4xf32, #tpu.memory_space<vmem>>, vector<32x4xf32>
    %c0_7 = arith.constant 0 : index
    %c0_8 = arith.constant 0 : index
    %25 = vector.load %arg3[%c0_7, %c0_8] : memref<72x32xf32, #tpu.memory_space<vmem>>, vector<72x32xf32>
    %c0_9 = arith.constant 0 : index
    %c0_10 = arith.constant 0 : index
    %c0_11 = arith.constant 0 : index
    %26 = vector.load %arg1[%c0_9, %c0_10, %c0_11] : memref<1x4x256xf32, #tpu.memory_space<vmem>>, vector<1x4x256xf32>
    %27 = vector.shape_cast %26 : vector<1x4x256xf32> to vector<4x256xf32>
    %cst_12 = arith.constant dense<0.000000e+00> : vector<4xf32>
    %28 = vector.multi_reduction <add>, %27, %cst_12 [1] : vector<4x256xf32> to vector<4xf32>
    %29 = vector.shape_cast %28 : vector<4xf32> to vector<4x1xf32>
    %cst_13 = arith.constant 3.906250e-03 : f32
    %30 = vector.broadcast %cst_13 : f32 to vector<4x1xf32>
    %31 = arith.mulf %29, %30 : vector<4x1xf32>
    %32 = vector.broadcast %31 : vector<4x1xf32> to vector<4x256xf32>
    %33 = arith.subf %27, %32 : vector<4x256xf32>
    %34 = arith.mulf %33, %33 : vector<4x256xf32>
    %cst_14 = arith.constant dense<0.000000e+00> : vector<4xf32>
    %35 = vector.multi_reduction <add>, %34, %cst_14 [1] : vector<4x256xf32> to vector<4xf32>
    %36 = vector.shape_cast %35 : vector<4xf32> to vector<4x1xf32>
    %cst_15 = arith.constant 3.906250e-03 : f32
    %37 = vector.broadcast %cst_15 : f32 to vector<4x1xf32>
    %38 = arith.mulf %36, %37 : vector<4x1xf32>
    %cst_16 = arith.constant 9.99999974E-6 : f32
    %39 = vector.broadcast %cst_16 : f32 to vector<4x1xf32>
    %40 = arith.addf %38, %39 : vector<4x1xf32>
    %41 = math.rsqrt %40 : vector<4x1xf32>
    %42 = vector.broadcast %41 : vector<4x1xf32> to vector<4x256xf32>
    %43 = arith.mulf %33, %42 : vector<4x256xf32>
    %cst_17 = arith.constant 0.000000e+00 : f32
    %44 = vector.broadcast %cst_17 : f32 to vector<4x256xf32>
    %45 = arith.maximumf %43, %44 : vector<4x256xf32>
    %cst_18 = arith.constant dense<0.000000e+00> : vector<32x256xf32>
    %46 = tpu.matmul %24, %45, %cst_18 {dimension_numbers = #tpu.dot_dimension_numbers<[1], [0], [0], [1], [0, 0, 1, 1], [], []>} : vector<32x4xf32>, vector<4x256xf32>, vector<32x256xf32> -> vector<32x256xf32>
    %cst_19 = arith.constant dense<0.000000e+00> : vector<32xf32>
    %47 = vector.multi_reduction <add>, %46, %cst_19 [1] : vector<32x256xf32> to vector<32xf32>
    %48 = vector.shape_cast %47 : vector<32xf32> to vector<32x1xf32>
    %cst_20 = arith.constant 3.906250e-03 : f32
    %49 = vector.broadcast %cst_20 : f32 to vector<32x1xf32>
    %50 = arith.mulf %48, %49 : vector<32x1xf32>
    %51 = vector.broadcast %50 : vector<32x1xf32> to vector<32x256xf32>
    %52 = arith.subf %46, %51 : vector<32x256xf32>
    %53 = arith.mulf %52, %52 : vector<32x256xf32>
    %cst_21 = arith.constant dense<0.000000e+00> : vector<32xf32>
    %54 = vector.multi_reduction <add>, %53, %cst_21 [1] : vector<32x256xf32> to vector<32xf32>
    %55 = vector.shape_cast %54 : vector<32xf32> to vector<32x1xf32>
    %cst_22 = arith.constant 3.906250e-03 : f32
    %56 = vector.broadcast %cst_22 : f32 to vector<32x1xf32>
    %57 = arith.mulf %55, %56 : vector<32x1xf32>
    %cst_23 = arith.constant 9.99999974E-6 : f32
    %58 = vector.broadcast %cst_23 : f32 to vector<32x1xf32>
    %59 = arith.addf %57, %58 : vector<32x1xf32>
    %60 = math.rsqrt %59 : vector<32x1xf32>
    %61 = vector.broadcast %60 : vector<32x1xf32> to vector<32x256xf32>
    %62 = arith.mulf %52, %61 : vector<32x256xf32>
    %cst_24 = arith.constant 0.000000e+00 : f32
    %63 = vector.broadcast %cst_24 : f32 to vector<32x256xf32>
    %64 = arith.maximumf %62, %63 : vector<32x256xf32>
    %cst_25 = arith.constant dense<0.000000e+00> : vector<72x256xf32>
    %65 = tpu.matmul %25, %64, %cst_25 {dimension_numbers = #tpu.dot_dimension_numbers<[1], [0], [0], [1], [0, 0, 1, 1], [], []>} : vector<72x32xf32>, vector<32x256xf32>, vector<72x256xf32> -> vector<72x256xf32>
    %c0_26 = arith.constant 0 : index
    %c128 = arith.constant 128 : index
    %66 = vector.load %arg5[%c0_26, %c128] : memref<72x401xf32, #tpu.memory_space<vmem>>, vector<72x256xf32>
    tpu.vector_store %arg5[%c0_26, %c128], %65 {strides = array<i32>} : memref<72x401xf32, #tpu.memory_space<vmem>>, vector<72x256xf32>,
    %cst_27 = arith.constant 0.000000e+00 : f32
    %67 = vector.broadcast %cst_27 : f32 to vector<8x256xf32>
    %c0_28 = arith.constant 0 : index
    %c111_29 = arith.constant 111 : index
    %68 = vector.load %arg5[%c0_28, %c111_29] : memref<72x401xf32, #tpu.memory_space<vmem>>, vector<8x256xf32>
    %cst_30 = arith.constant 0.000000e+00 : f32
    %69 = vector.shape_cast %18 : vector<1x256xi1> to vector<1x256xi1>
    %70 = vector.broadcast %69 : vector<1x256xi1> to vector<8x256xi1>
    %71 = vector.broadcast %cst_30 : f32 to vector<8x256xf32>
    %72 = arith.select %70, %68, %71 : vector<8x256xi1>, vector<8x256xf32>
    %73 = arith.addf %67, %72 : vector<8x256xf32>
    %c8 = arith.constant 8 : index
    %c112 = arith.constant 112 : index
    %74 = vector.load %arg5[%c8, %c112] : memref<72x401xf32, #tpu.memory_space<vmem>>, vector<8x256xf32>
    %75 = arith.addf %73, %74 : vector<8x256xf32>
    %c16 = arith.constant 16 : index
    %c113 = arith.constant 113 : index
    %76 = vector.load %arg5[%c16, %c113] : memref<72x401xf32, #tpu.memory_space<vmem>>, vector<8x256xf32>
    %cst_31 = arith.constant 0.000000e+00 : f32
    %77 = vector.shape_cast %20 : vector<1x256xi1> to vector<1x256xi1>
    %78 = vector.broadcast %77 : vector<1x256xi1> to vector<8x256xi1>
    %79 = vector.broadcast %cst_31 : f32 to vector<8x256xf32>
    %80 = arith.select %78, %76, %79 : vector<8x256xi1>, vector<8x256xf32>
    %81 = arith.addf %75, %80 : vector<8x256xf32>
    %c24 = arith.constant 24 : index
    %c127 = arith.constant 127 : index
    %82 = vector.load %arg5[%c24, %c127] : memref<72x401xf32, #tpu.memory_space<vmem>>, vector<8x256xf32>
    %cst_32 = arith.constant 0.000000e+00 : f32
    %83 = vector.shape_cast %18 : vector<1x256xi1> to vector<1x256xi1>
    %84 = vector.broadcast %83 : vector<1x256xi1> to vector<8x256xi1>
    %85 = vector.broadcast %cst_32 : f32 to vector<8x256xf32>
    %86 = arith.select %84, %82, %85 : vector<8x256xi1>, vector<8x256xf32>
    %87 = arith.addf %81, %86 : vector<8x256xf32>
    %c32 = arith.constant 32 : index
    %c128_33 = arith.constant 128 : index
    %88 = vector.load %arg5[%c32, %c128_33] : memref<72x401xf32, #tpu.memory_space<vmem>>, vector<8x256xf32>
    %89 = arith.addf %87, %88 : vector<8x256xf32>
    %c40 = arith.constant 40 : index
    %c129 = arith.constant 129 : index
    %90 = vector.load %arg5[%c40, %c129] : memref<72x401xf32, #tpu.memory_space<vmem>>, vector<8x256xf32>
    %cst_34 = arith.constant 0.000000e+00 : f32
    %91 = vector.shape_cast %20 : vector<1x256xi1> to vector<1x256xi1>
    %92 = vector.broadcast %91 : vector<1x256xi1> to vector<8x256xi1>
    %93 = vector.broadcast %cst_34 : f32 to vector<8x256xf32>
    %94 = arith.select %92, %90, %93 : vector<8x256xi1>, vector<8x256xf32>
    %95 = arith.addf %89, %94 : vector<8x256xf32>
    %c48 = arith.constant 48 : index
    %c143 = arith.constant 143 : index
    %96 = vector.load %arg5[%c48, %c143] : memref<72x401xf32, #tpu.memory_space<vmem>>, vector<8x256xf32>
    %cst_35 = arith.constant 0.000000e+00 : f32
    %97 = vector.shape_cast %18 : vector<1x256xi1> to vector<1x256xi1>
    %98 = vector.broadcast %97 : vector<1x256xi1> to vector<8x256xi1>
    %99 = vector.broadcast %cst_35 : f32 to vector<8x256xf32>
    %100 = arith.select %98, %96, %99 : vector<8x256xi1>, vector<8x256xf32>
    %101 = arith.addf %95, %100 : vector<8x256xf32>
    %c56 = arith.constant 56 : index
    %c144 = arith.constant 144 : index
    %102 = vector.load %arg5[%c56, %c144] : memref<72x401xf32, #tpu.memory_space<vmem>>, vector<8x256xf32>
    %103 = arith.addf %101, %102 : vector<8x256xf32>
    %c64 = arith.constant 64 : index
    %c145 = arith.constant 145 : index
    %104 = vector.load %arg5[%c64, %c145] : memref<72x401xf32, #tpu.memory_space<vmem>>, vector<8x256xf32>
    %cst_36 = arith.constant 0.000000e+00 : f32
    %105 = vector.shape_cast %20 : vector<1x256xi1> to vector<1x256xi1>
    %106 = vector.broadcast %105 : vector<1x256xi1> to vector<8x256xi1>
    %107 = vector.broadcast %cst_36 : f32 to vector<8x256xf32>
    %108 = arith.select %106, %104, %107 : vector<8x256xi1>, vector<8x256xf32>
    %109 = arith.addf %103, %108 : vector<8x256xf32>
    %c0_37 = arith.constant 0 : index
    %c0_38 = arith.constant 0 : index
    %c0_39 = arith.constant 0 : index
    %110 = vector.load %arg4[%c0_37, %c0_38, %c0_39] : memref<1x12x256xf32, #tpu.memory_space<vmem>>, vector<1x4x256xf32>
    %111 = vector.shape_cast %110 : vector<1x4x256xf32> to vector<4x256xf32>
    %112 = vector.shape_cast %27 : vector<4x256xf32> to vector<1x4x256xf32>
    tpu.vector_store %arg4[%c0_37, %c0_38, %c0_39], %112 {strides = array<i32>} : memref<1x12x256xf32, #tpu.memory_space<vmem>>, vector<1x4x256xf32>,
    %c0_40 = arith.constant 0 : index
    %c4 = arith.constant 4 : index
    %c0_41 = arith.constant 0 : index
    %113 = vector.load %arg4[%c0_40, %c4, %c0_41] : memref<1x12x256xf32, #tpu.memory_space<vmem>>, vector<1x8x256xf32>
    %114 = vector.shape_cast %113 : vector<1x8x256xf32> to vector<8x256xf32>
    %115 = vector.shape_cast %109 : vector<8x256xf32> to vector<1x8x256xf32>
    tpu.vector_store %arg4[%c0_40, %c4, %c0_41], %115 {strides = array<i32>} : memref<1x12x256xf32, #tpu.memory_space<vmem>>, vector<1x8x256xf32>,
    return
  }
  func.func @transform_0(%arg0: i32) -> (i32, i32, i32) {
    %c0_i32 = arith.constant 0 : i32
    %c0_i32_0 = arith.constant 0 : i32
    %c0_i32_1 = arith.constant 0 : i32
    return %arg0, %c0_i32, %c0_i32_0 : i32, i32, i32
  }
  func.func @transform_1(%arg0: i32) -> (i32, i32) {
    %c0_i32 = arith.constant 0 : i32
    %c0_i32_0 = arith.constant 0 : i32
    %c0_i32_1 = arith.constant 0 : i32
    return %c0_i32, %c0_i32_0 : i32, i32
  }
  func.func @transform_2(%arg0: i32) -> (i32, i32) {
    %c0_i32 = arith.constant 0 : i32
    %c0_i32_0 = arith.constant 0 : i32
    %c0_i32_1 = arith.constant 0 : i32
    return %c0_i32, %c0_i32_0 : i32, i32
  }
  func.func @transform_3(%arg0: i32) -> (i32, i32, i32) {
    %c0_i32 = arith.constant 0 : i32
    %c0_i32_0 = arith.constant 0 : i32
    %c0_i32_1 = arith.constant 0 : i32
    return %arg0, %c0_i32, %c0_i32_0 : i32, i32, i32
  }
}

</mosaic_0001>

<llo_original>
// kernel: tpu_custom_call.1
$region0: #{tpu_custom_call.1}
  #allocation0 [shape = 'u32[]', space=smem, size = 0x4, offset = 0x4, fixed_abs, tag = 'smem constant byte address 0x4 - core index']
  #allocation1 [shape = 'u32[144,128]{1,0:T(1,128)}', space=vmem, size = 0x12000, scoped, tag = 'internal scratch']
  #allocation2 [shape = 'f32[72,401]{1,0:T(8,128)}', space=vmem, size = 0x24000, scoped, tag = 'scratch operand']
  %s0 = inlined_call_operand.vmem [shape: f32[2,4,256], index: 0, kind: input, shape index: {}]
  %s1 = inlined_call_operand.vmem [shape: f32[32,4], index: 1, kind: input, shape index: {}]
  %s2 = inlined_call_operand.vmem [shape: f32[72,32], index: 2, kind: input, shape index: {}]
  %s3 = inlined_call_operand.vmem [shape: f32[2,12,256], index: 3, kind: output, shape index: {}]
  %s4 = sld [smem:[#allocation0]]
  $region45: #{tpu_custom_call.1} parent=0
    _
  %s6 = ssub.s32 1, %s4
  %s7 = scalar_select 0, %s6, %s4
  loop: start=0, step=1, limit=4
  $region2: #{tpu_custom_call.1} parent=0 // loop_pre_header
    _
  $region3: #{tpu_custom_call.1} parent=0 // loop_header
    %s9 = sphi 0, %s13
    %p10 = scmp.ge.s32.totalorder %s9, 4
    %s19 = sphi 0, %s21
    %s22 = sphi 0, %s19
    %s23 = sphi 0, %s22
    %s39 = sphi 0, %s23
    %s43 = sphi 0, %s43
    %s45 = sphi 0, %s43
    %s46 = sphi 0, %s45
    %s60 = sphi 0, %s46
    %s64 = sphi 0, %s64
    %s66 = sphi 0, %s64
    %s67 = sphi 0, %s66
    %s81 = sphi 0, %s67
    %s87 = sphi 0, %s89
    %s90 = sphi 0, %s87
    %s91 = sphi 0, %s90
    %s107 = sphi 0, %s91
  $region4: #{tpu_custom_call.1} parent=0 // loop_header_branch
    %12 = sbr.rel (%p10) target = $region8
  $region5: #{tpu_custom_call.1} parent=0 // loop_body
    %s14 = ssub.s32 %s9, 1
    %s15 = ssub.s32 %s9, 2
    %s16 = sadd.s32 %s9, 1
    %s17 = ssub.s32 %s9, %s16
    %p18 = scmp.eq.s32.totalorder %s17, 0
    %s20 = sadd.s32 %s19, 1
    %s21 = scalar_select %p18, %s19, %s20
    %p24 = pneg %p18
    %p25 = scmp.eq.s32.totalorder %s9, 1
    %p26 = por %p24, %p25
    %p27 = scmp.ne.s32.totalorder %s19, %s22
    %p28 = scmp.eq.s32.totalorder %s9, 0
    %p29 = por %p27, %p28
    %p30 = scmp.ne.s32.totalorder %s19, %s22
    %p31 = scmp.eq.s32.totalorder %s14, 1
    %p32 = por %p30, %p31
    %p33 = scmp.ne.s32.totalorder %s22, %s23
    %p34 = scmp.eq.s32.totalorder %s14, 0
    %p35 = por %p33, %p34
    %p36 = scmp.ne.s32.totalorder %s22, %s23
    %p37 = scmp.eq.s32.totalorder %s15, 1
    %p38 = por %p36, %p37
    %p40 = scmp.ne.s32.totalorder %s23, %s39
    %p41 = scmp.eq.s32.totalorder %s15, 0
    %p42 = por %p40, %p41
    %s44 = sadd.s32 %s43, 1
    %p47 = scmp.eq.s32.totalorder %s9, 1
    %p48 = scmp.ne.s32.totalorder %s43, %s45
    %p49 = scmp.eq.s32.totalorder %s9, 0
    %p50 = por %p48, %p49
    %p51 = scmp.ne.s32.totalorder %s43, %s45
    %p52 = scmp.eq.s32.totalorder %s14, 1
    %p53 = por %p51, %p52
    %p54 = scmp.ne.s32.totalorder %s45, %s46
    %p55 = scmp.eq.s32.totalorder %s14, 0
    %p56 = por %p54, %p55
    %p57 = scmp.ne.s32.totalorder %s45, %s46
    %p58 = scmp.eq.s32.totalorder %s15, 1
    %p59 = por %p57, %p58
    %p61 = scmp.ne.s32.totalorder %s46, %s60
    %p62 = scmp.eq.s32.totalorder %s15, 0
    %p63 = por %p61, %p62
    %s65 = sadd.s32 %s64, 1
    %p68 = scmp.eq.s32.totalorder %s9, 1
    %p69 = scmp.ne.s32.totalorder %s64, %s66
    %p70 = scmp.eq.s32.totalorder %s9, 0
    %p71 = por %p69, %p70
    %p72 = scmp.ne.s32.totalorder %s64, %s66
    %p73 = scmp.eq.s32.totalorder %s14, 1
    %p74 = por %p72, %p73
    %p75 = scmp.ne.s32.totalorder %s66, %s67
    %p76 = scmp.eq.s32.totalorder %s14, 0
    %p77 = por %p75, %p76
    %p78 = scmp.ne.s32.totalorder %s66, %s67
    %p79 = scmp.eq.s32.totalorder %s15, 1
    %p80 = por %p78, %p79
    %p82 = scmp.ne.s32.totalorder %s67, %s81
    %p83 = scmp.eq.s32.totalorder %s15, 0
    %p84 = por %p82, %p83
    %s85 = ssub.s32 %s9, %s16
    %p86 = scmp.eq.s32.totalorder %s85, 0
    %s88 = sadd.s32 %s87, 1
    %s89 = scalar_select %p86, %s87, %s88
    %p92 = pneg %p86
    %p93 = scmp.eq.s32.totalorder %s9, 1
    %p94 = por %p92, %p93
    %p95 = scmp.ne.s32.totalorder %s87, %s90
    %p96 = scmp.eq.s32.totalorder %s9, 0
    %p97 = por %p95, %p96
    %p98 = scmp.ne.s32.totalorder %s87, %s90
    %p99 = scmp.eq.s32.totalorder %s14, 1
    %p100 = por %p98, %p99
    %p101 = scmp.ne.s32.totalorder %s90, %s91
    %p102 = scmp.eq.s32.totalorder %s14, 0
    %p103 = por %p101, %p102
    %p104 = scmp.ne.s32.totalorder %s90, %s91
    %p105 = scmp.eq.s32.totalorder %s15, 1
    %p106 = por %p104, %p105
    %p108 = scmp.ne.s32.totalorder %s91, %s107
    %p109 = scmp.eq.s32.totalorder %s15, 0
    %p110 = por %p108, %p109
    %p111 = scmp.le.s32.totalorder 1, %s9
    %p112 = scmp.lt.s32.totalorder %s9, 3
    %p113 = pnand %p111, %p112
    %p114 = pneg %p113
    // Predicated region
    $region9: #{tpu_custom_call.1} parent=5 // pred_check
      _
    $region10: #{tpu_custom_call.1} parent=5 // pred_check_branch
      %116 = sbr.rel (%p113) target = $region12
    $region11: #{tpu_custom_call.1} parent=5 // pred_region
      %s117 = ssub.s32 %s9, 1
      // Predicated region
      $region13: #{tpu_custom_call.1} parent=11 // pred_check
        %p118 = pneg %p56
      $region14: #{tpu_custom_call.1} parent=11 // pred_check_branch
        %120 = sbr.rel (%p118) target = $region16
      $region15: #{tpu_custom_call.1} parent=11 // pred_region
        _
      $region16: #{tpu_custom_call.1} parent=11 // pred_fallthru
        _
      // Predicated region
      $region17: #{tpu_custom_call.1} parent=11 // pred_check
        %p121 = pneg %p77
      $region18: #{tpu_custom_call.1} parent=11 // pred_check_branch
        %123 = sbr.rel (%p121) target = $region20
      $region19: #{tpu_custom_call.1} parent=11 // pred_region
        _
      $region20: #{tpu_custom_call.1} parent=11 // pred_fallthru
        _
    $region12: #{tpu_custom_call.1} parent=5 // pred_fallthru
      _
    %p124 = scmp.lt.s32.totalorder %s9, 2
    // Predicated region
    $region21: #{tpu_custom_call.1} parent=5 // pred_check
      %p125 = pneg %p124
    $region22: #{tpu_custom_call.1} parent=5 // pred_check_branch
      %127 = sbr.rel (%p125) target = $region24
    $region23: #{tpu_custom_call.1} parent=5 // pred_region
      // Predicated region
      $region25: #{tpu_custom_call.1} parent=23 // pred_check
        %p128 = pneg %p29
      $region26: #{tpu_custom_call.1} parent=23 // pred_check_branch
        %130 = sbr.rel (%p128) target = $region28
      $region27: #{tpu_custom_call.1} parent=23 // pred_region
        %p131 = scmp.lt.s32.totalorder %s9, 1
        %s132 = scalar_select %p131, %s9, 1
        %s133 = smul.addr %s132, 2
        %s134 = smul.addr %s133, 4
        %s135 = scalar_lea.vmem %s0, %s134
      $region28: #{tpu_custom_call.1} parent=23 // pred_fallthru
        _
    $region24: #{tpu_custom_call.1} parent=5 // pred_fallthru
      _
    %p136 = scmp.le.s32.totalorder 1, %s9
    %p137 = scmp.lt.s32.totalorder %s9, 3
    %p138 = pnand %p136, %p137
    %p139 = pneg %p138
    // Predicated region
    $region29: #{tpu_custom_call.1} parent=5 // pred_check
      _
    $region30: #{tpu_custom_call.1} parent=5 // pred_check_branch
      %141 = sbr.rel (%p138) target = $region32
    $region31: #{tpu_custom_call.1} parent=5 // pred_region
      %s142 = ssub.s32 %s9, 1
      %p143 = scmp.lt.s32.totalorder %s14, 1
      %s144 = scalar_select %p143, %s14, 1
      %s145 = smul.addr %s144, 2
      %s146 = smul.addr %s145, 4
      %s147 = scalar_lea.vmem %s0, %s146
      %p148 = pneg %p35
      %p149 = pneg %p32
      %p150 = pneg %p56
      %p151 = pneg %p53
      %p152 = pneg %p77
      %p153 = pneg %p74
      %p154 = pneg %p103
      %p155 = pneg %p100
      %p156 = scmp.lt.s32.totalorder %s14, 1
      %s157 = scalar_select %p156, %s14, 1
      %s158 = smul.addr %s157, 4
      %s159 = smul.addr %s158, 8
      %s160 = scalar_lea.vmem %s3, %s159
      %p161 = scmp.lt.s32.totalorder %s14, 1
      %s162 = scalar_select %p161, %s14, 1
      %s163 = smul.addr %s162, 2
      %s164 = smul.addr %s163, 4
      %s165 = scalar_lea.vmem %s0, %s164
      %p166 = scmp.lt.s32.totalorder %s14, 1
      %s167 = scalar_select %p166, %s14, 1
      %s168 = smul.addr %s167, 4
      %s169 = smul.addr %s168, 8
      %s170 = scalar_lea.vmem %s3, %s169
      %v171 = vlaneseq
      %v172 = vand.u32 %v171, 127
      %v173 = vadd.s32 %v172, 128
      %vm174 = vcmp.lt.s32.totalorder %v172, 0
      %v175 = vsub.s32 0, %v172
      %v176 = vsel %vm174, %v175, %v172
      %v177 = vshrl.u32 %v176, 4
      %v178 = vand.u32 %v176, 15
      %v179 = vsub.s32 0, %v178
      %v180 = vsel %vm174, %v179, %v178
      %vm181 = vcmp.lt.s32.totalorder %v173, 0
      %v182 = vsub.s32 0, %v173
      %v183 = vsel %vm181, %v182, %v173
      %v184 = vshrl.u32 %v183, 4
      %v185 = vand.u32 %v183, 15
      %v186 = vsub.s32 0, %v185
      %v187 = vsel %vm181, %v186, %v185
      %vm188 = vcmp.ne.s32.totalorder %v180, 0
      %vm189 = vcmp.ne.s32.totalorder %v187, 0
      %vm190 = vcmp.lt.s32.totalorder %v180, 0
      %vm191 = vcmp.lt.s32.totalorder %v187, 0
      %vm192 = vmand %vm190, %vm188
      %vm193 = vmand %vm191, %vm189
      %v194 = vadd.s32 %v180, 16
      %v195 = vadd.s32 %v187, 16
      %v196 = vsel %vm192, %v194, %v180
      %v197 = vsel %vm193, %v195, %v187
      %vm198 = vcmp.ge.s32.totalorder %v196, 1
      %vm199 = vcmp.ge.s32.totalorder %v197, 1
      %vm200 = vcmp.le.s32.totalorder %v196, 14
      %vm201 = vcmp.le.s32.totalorder %v197, 14
      %vm202 = vcmask 1048440
      %203 = vst.msk [vmem:[#allocation2] sm:$0xff] %vm202, 0.0
      %204 = vst.msk [vmem:[#allocation2 + $0x20] sm:$0xff] %vm202, 0.0
      %205 = vst.msk [vmem:[#allocation2 + $0x40] sm:$0xff] %vm202, 0.0
      %206 = vst.msk [vmem:[#allocation2 + $0x60] sm:$0xff] %vm202, 0.0
      %207 = vst.msk [vmem:[#allocation2 + $0x80] sm:$0xff] %vm202, 0.0
      %208 = vst.msk [vmem:[#allocation2 + $0xa0] sm:$0xff] %vm202, 0.0
      %209 = vst.msk [vmem:[#allocation2 + $0xc0] sm:$0xff] %vm202, 0.0
      %210 = vst.msk [vmem:[#allocation2 + $0xe0] sm:$0xff] %vm202, 0.0
      %211 = vst.msk [vmem:[#allocation2 + $0x100] sm:$0xff] %vm202, 0.0
      %vm212 = vcmask 138240
      %213 = vst.msk [vmem:[#allocation2 + $0x18] sm:$0xff] %vm212, 0.0
      %214 = vst.msk [vmem:[#allocation2 + $0x38] sm:$0xff] %vm212, 0.0
      %215 = vst.msk [vmem:[#allocation2 + $0x58] sm:$0xff] %vm212, 0.0
      %216 = vst.msk [vmem:[#allocation2 + $0x78] sm:$0xff] %vm212, 0.0
      %217 = vst.msk [vmem:[#allocation2 + $0x98] sm:$0xff] %vm212, 0.0
      %218 = vst.msk [vmem:[#allocation2 + $0xb8] sm:$0xff] %vm212, 0.0
      %219 = vst.msk [vmem:[#allocation2 + $0xd8] sm:$0xff] %vm212, 0.0
      %220 = vst.msk [vmem:[#allocation2 + $0xf8] sm:$0xff] %vm212, 0.0
      %221 = vst.msk [vmem:[#allocation2 + $0x118] sm:$0xff] %vm212, 0.0
      %v222 = vld [vmem:[%s1] sm:$0xff]
      %v223 = vld [vmem:[%s1 + $0x8] sm:$0xff]
      %v224 = vld [vmem:[%s1 + $0x10] sm:$0xff]
      %v225 = vld [vmem:[%s1 + $0x18] sm:$0xff]
      %v226 = vld [vmem:[%s2] sm:$0xff]
      %v227 = vld [vmem:[%s2 + $0x8] sm:$0xff]
      %v228 = vld [vmem:[%s2 + $0x10] sm:$0xff]
      %v229 = vld [vmem:[%s2 + $0x18] sm:$0xff]
      %v230 = vld [vmem:[%s2 + $0x20] sm:$0xff]
      %v231 = vld [vmem:[%s2 + $0x28] sm:$0xff]
      %v232 = vld [vmem:[%s2 + $0x30] sm:$0xff]
      %v233 = vld [vmem:[%s2 + $0x38] sm:$0xff]
      %v234 = vld [vmem:[%s2 + $0x40] sm:$0xff]
      %v235 = vld [vmem:[%s165] sm:$0xff]
      %v237 = vcombine.high %v235, %v235
      %vm239 = vcmask 1043456
      %v240 = vsel %vm239, %v235, 0.0
      %v241 = vsel %vm239, %v237, 0.0
      %v242 = vadd.f32 %v240, %v241
      %243 = vadd.xlane.f32.xlu0 %v242
      %v244 = vpop.xlane.xlu0 %243
      %v245 = vmul.f32 %v244, 0.00390625
      %v248 = vunpack.c.l.s4 839922192
      %v249 = vunpack.c.0.s8 %v248
      %v250 = vlaneseq
      %v251 = vshrl.u32 %v250, 7
      %v252 = vsub.s32 %v249, %v251
      %v253 = vrot.slane %v245, %v252
      %v255 = vsub.f32 %v235, %v253
      %v256 = vmul.f32 %v255, %v255
      %v258 = vcombine.high %v256, %v256
      %v260 = vsel %vm239, %v256, 0.0
      %v261 = vsel %vm239, %v258, 0.0
      %v262 = vadd.f32 %v260, %v261
      %263 = vadd.xlane.f32.xlu0 %v262
      %v264 = vpop.xlane.xlu0 %263
      %v265 = vmul.f32 %v264, 0.00390625
      %v266 = vadd.f32 %v265, 1e-05
      %v267 = vrsqrt.pop %v266
      %v270 = vunpack.c.l.s4 839922192
      %v271 = vunpack.c.0.s8 %v270
      %v272 = vlaneseq
      %v273 = vshrl.u32 %v272, 7
      %v274 = vsub.s32 %v271, %v273
      %v275 = vrot.slane %v267, %v274
      %v277 = vmul.f32 %v255, %v275
      %v278 = vmax.f32 %v277, 0.0
      %v280 = vcombine.high %v278, %v278
      %vm281 = vcmask 31744
      %v283 = vsel %vm281, %v222, 0
      %v286 = vsel %vm281, %v223, 0
      %v289 = vsel %vm281, %v224, 0
      %v292 = vsel %vm281, %v225, 0
      %v294 = vsel %vm239, %v278, 0
      %v296 = vsel %vm239, %v280, 0
      %298 = vmatprep.subr.mxu0 0.0
      %299 = vmatpush1.msra.mxu0 0.0
      %300 = vmatprep.subr.mxu0 0.0
      %301 = vmatpush1.msra.mxu0 0.0
      %302 = vmatprep.subr.mxu0 0.0
      %303 = vmatpush1.msra.mxu0 0.0
      %304 = vmatprep.subr.mxu0 0.0
      %305 = vmatpush1.msra.mxu0 0.0
      %306 = vmatprep.subr.mxu0 0.0
      %307 = vmatpush1.msra.mxu0 0.0
      %308 = vmatprep.subr.mxu0 0.0
      %309 = vmatpush1.msra.mxu0 0.0
      %310 = vmatprep.subr.mxu0 0.0
      %311 = vmatpush1.msra.mxu0 0.0
      %312 = vmatprep.subr.mxu0 0.0
      %313 = vmatpush1.msra.mxu0 0.0
      %314 = vmatprep.subr.mxu0 0.0
      %315 = vmatpush1.msra.mxu0 0.0
      %316 = vmatprep.subr.mxu0 0.0
      %317 = vmatpush1.msra.mxu0 0.0
      %318 = vmatprep.subr.mxu0 0.0
      %319 = vmatpush1.msra.mxu0 0.0
      %320 = vmatprep.subr.mxu0 0.0
      %321 = vmatpush1.msra.mxu0 0.0
      %322 = vmatprep.subr.mxu0 0.0
      %323 = vmatpush1.msra.mxu0 0.0
      %324 = vmatprep.subr.mxu0 0.0
      %325 = vmatpush1.msra.mxu0 0.0
      %326 = vmatprep.subr.mxu0 0.0
      %327 = vmatpush1.msra.mxu0 0.0
      %328 = vmatprep.subr.mxu0 %v296
      %329 = vmatpush1.msra.mxu0 %v294
      %330 = vmatprep.subr.mxu0 0.0
      %331 = vmatpush2.msra.mxu0 0.0
      %332 = vmatprep.subr.mxu0 0.0
      %333 = vmatpush2.msra.mxu0 0.0
      %334 = vmatprep.subr.mxu0 0.0
      %335 = vmatpush2.msra.mxu0 0.0
      %336 = vmatprep.subr.mxu0 0.0
      %337 = vmatpush2.msra.mxu0 0.0
      %338 = vmatprep.subr.mxu0 0.0
      %339 = vmatpush2.msra.mxu0 0.0
      %340 = vmatprep.subr.mxu0 0.0
      %341 = vmatpush2.msra.mxu0 0.0
      %342 = vmatprep.subr.mxu0 0.0
      %343 = vmatpush2.msra.mxu0 0.0
      %344 = vmatprep.subr.mxu0 0.0
      %345 = vmatpush2.msra.mxu0 0.0
      %346 = vmatprep.subr.mxu0 0.0
      %347 = vmatpush2.msra.mxu0 0.0
      %348 = vmatprep.subr.mxu0 0.0
      %349 = vmatpush2.msra.mxu0 0.0
      %350 = vmatprep.subr.mxu0 0.0
      %351 = vmatpush2.msra.mxu0 0.0
      %352 = vmatprep.subr.mxu0 0.0
      %353 = vmatpush2.msra.mxu0 0.0
      %354 = vmatprep.subr.mxu0 0.0
      %355 = vmatpush2.msra.mxu0 0.0
      %356 = vmatprep.subr.mxu0 0.0
      %357 = vmatpush2.msra.mxu0 0.0
      %358 = vmatprep.subr.mxu0 0.0
      %359 = vmatpush2.msra.mxu0 0.0
      %360 = vmatprep.subr.mxu0 0.0
      %361 = vmatpush2.msra.mxu0 0.0
      %362 = vmatprep.mubr.f32.mxu0 0.0
      %363 = vmatmul.mubr.f32.gmra.mxu0 %v283
      %v364 = vpop.f32.mrf.mxu0
      %v365 = vadd.f32 0.0, %v364
      %v366 = vpop.f32.mrf.mxu0
      %v367 = vadd.f32 0.0, %v366
      %368 = vmatprep.mubr.f32.mxu0 0.0
      %369 = vmatmul.mubr.f32.gmra.mxu0 %v286
      %v370 = vpop.f32.mrf.mxu0
      %v371 = vadd.f32 0.0, %v370
      %v372 = vpop.f32.mrf.mxu0
      %v373 = vadd.f32 0.0, %v372
      %374 = vmatprep.mubr.f32.mxu0 0.0
      %375 = vmatmul.mubr.f32.gmra.mxu0 %v289
      %v376 = vpop.f32.mrf.mxu0
      %v377 = vadd.f32 0.0, %v376
      %v378 = vpop.f32.mrf.mxu0
      %v379 = vadd.f32 0.0, %v378
      %380 = vmatprep.mubr.f32.mxu0 0.0
      %381 = vmatmul.mubr.f32.gmra.mxu0 %v292
      %v382 = vpop.f32.mrf.mxu0
      %v383 = vadd.f32 0.0, %v382
      %v384 = vpop.f32.mrf.mxu0
      %v385 = vadd.f32 0.0, %v384
      %386 = vdwg.mxu0
      %v387 = vadd.f32 %v365, %v367
      %388 = vadd.xlane.f32.xlu0 %v387
      %v389 = vpop.xlane.xlu0 %388
      %v390 = vadd.f32 %v371, %v373
      %391 = vadd.xlane.f32.xlu0 %v390
      %v392 = vpop.xlane.xlu0 %391
      %v393 = vadd.f32 %v377, %v379
      %394 = vadd.xlane.f32.xlu0 %v393
      %v395 = vpop.xlane.xlu0 %394
      %v396 = vadd.f32 %v383, %v385
      %397 = vadd.xlane.f32.xlu0 %v396
      %v398 = vpop.xlane.xlu0 %397
      %v399 = vmul.f32 %v389, 0.00390625
      %v400 = vmul.f32 %v392, 0.00390625
      %v401 = vmul.f32 %v395, 0.00390625
      %v402 = vmul.f32 %v398, 0.00390625
      %v403 = vsub.f32 %v365, %v399
      %v404 = vsub.f32 %v367, %v399
      %v405 = vsub.f32 %v371, %v400
      %v406 = vsub.f32 %v373, %v400
      %v407 = vsub.f32 %v377, %v401
      %v408 = vsub.f32 %v379, %v401
      %v409 = vsub.f32 %v383, %v402
      %v410 = vsub.f32 %v385, %v402
      %v411 = vmul.f32 %v403, %v403
      %v412 = vmul.f32 %v404, %v404
      %v413 = vmul.f32 %v405, %v405
      %v414 = vmul.f32 %v406, %v406
      %v415 = vmul.f32 %v407, %v407
      %v416 = vmul.f32 %v408, %v408
      %v417 = vmul.f32 %v409, %v409
      %v418 = vmul.f32 %v410, %v410
      %v419 = vadd.f32 %v411, %v412
      %420 = vadd.xlane.f32.xlu0 %v419
      %v421 = vpop.xlane.xlu0 %420
      %v422 = vadd.f32 %v413, %v414
      %423 = vadd.xlane.f32.xlu0 %v422
      %v424 = vpop.xlane.xlu0 %423
      %v425 = vadd.f32 %v415, %v416
      %426 = vadd.xlane.f32.xlu0 %v425
      %v427 = vpop.xlane.xlu0 %426
      %v428 = vadd.f32 %v417, %v418
      %429 = vadd.xlane.f32.xlu0 %v428
      %v430 = vpop.xlane.xlu0 %429
      %v431 = vmul.f32 %v421, 0.00390625
      %v432 = vmul.f32 %v424, 0.00390625
      %v433 = vmul.f32 %v427, 0.00390625
      %v434 = vmul.f32 %v430, 0.00390625
      %v435 = vadd.f32 %v431, 1e-05
      %v436 = vadd.f32 %v432, 1e-05
      %v437 = vadd.f32 %v433, 1e-05
      %v438 = vadd.f32 %v434, 1e-05
      %v439 = vrsqrt.pop %v435
      %v440 = vrsqrt.pop %v436
      %v441 = vrsqrt.pop %v437
      %v442 = vrsqrt.pop %v438
      %v443 = vmul.f32 %v403, %v439
      %v444 = vmul.f32 %v404, %v439
      %v445 = vmul.f32 %v405, %v440
      %v446 = vmul.f32 %v406, %v440
      %v447 = vmul.f32 %v407, %v441
      %v448 = vmul.f32 %v408, %v441
      %v449 = vmul.f32 %v409, %v442
      %v450 = vmul.f32 %v410, %v442
      %v451 = vmax.f32 %v443, 0.0
      %v452 = vmax.f32 %v444, 0.0
      %v453 = vmax.f32 %v445, 0.0
      %v454 = vmax.f32 %v446, 0.0
      %v455 = vmax.f32 %v447, 0.0
      %v456 = vmax.f32 %v448, 0.0
      %v457 = vmax.f32 %v449, 0.0
      %v458 = vmax.f32 %v450, 0.0
      %vm459 = vcmask 261120
      %v461 = vsel %vm459, %v226, 0
      %v464 = vsel %vm459, %v227, 0
      %v467 = vsel %vm459, %v228, 0
      %v470 = vsel %vm459, %v229, 0
      %v473 = vsel %vm459, %v230, 0
      %v476 = vsel %vm459, %v231, 0
      %v479 = vsel %vm459, %v232, 0
      %v482 = vsel %vm459, %v233, 0
      %v485 = vsel %vm459, %v234, 0
      %487 = vmatprep.subr.mxu0 0.0
      %488 = vmatpush1.msra.mxu0 0.0
      %489 = vmatprep.subr.mxu0 0.0
      %490 = vmatpush1.msra.mxu0 0.0
      %491 = vmatprep.subr.mxu0 0.0
      %492 = vmatpush1.msra.mxu0 0.0
      %493 = vmatprep.subr.mxu0 0.0
      %494 = vmatpush1.msra.mxu0 0.0
      %495 = vmatprep.subr.mxu0 0.0
      %496 = vmatpush1.msra.mxu0 0.0
      %497 = vmatprep.subr.mxu0 0.0
      %498 = vmatpush1.msra.mxu0 0.0
      %499 = vmatprep.subr.mxu0 0.0
      %500 = vmatpush1.msra.mxu0 0.0
      %501 = vmatprep.subr.mxu0 0.0
      %502 = vmatpush1.msra.mxu0 0.0
      %503 = vmatprep.subr.mxu0 0.0
      %504 = vmatpush1.msra.mxu0 0.0
      %505 = vmatprep.subr.mxu0 0.0
      %506 = vmatpush1.msra.mxu0 0.0
      %507 = vmatprep.subr.mxu0 0.0
      %508 = vmatpush1.msra.mxu0 0.0
      %509 = vmatprep.subr.mxu0 0.0
      %510 = vmatpush1.msra.mxu0 0.0
      %511 = vmatprep.subr.mxu0 %v458
      %512 = vmatpush1.msra.mxu0 %v457
      %513 = vmatprep.subr.mxu0 %v456
      %514 = vmatpush1.msra.mxu0 %v455
      %515 = vmatprep.subr.mxu0 %v454
      %516 = vmatpush1.msra.mxu0 %v453
      %517 = vmatprep.subr.mxu0 %v452
      %518 = vmatpush1.msra.mxu0 %v451
      %519 = vmatprep.subr.mxu0 0.0
      %520 = vmatpush2.msra.mxu0 0.0
      %521 = vmatprep.subr.mxu0 0.0
      %522 = vmatpush2.msra.mxu0 0.0
      %523 = vmatprep.subr.mxu0 0.0
      %524 = vmatpush2.msra.mxu0 0.0
      %525 = vmatprep.subr.mxu0 0.0
      %526 = vmatpush2.msra.mxu0 0.0
      %527 = vmatprep.subr.mxu0 0.0
      %528 = vmatpush2.msra.mxu0 0.0
      %529 = vmatprep.subr.mxu0 0.0
      %530 = vmatpush2.msra.mxu0 0.0
      %531 = vmatprep.subr.mxu0 0.0
      %532 = vmatpush2.msra.mxu0 0.0
      %533 = vmatprep.subr.mxu0 0.0
      %534 = vmatpush2.msra.mxu0 0.0
      %535 = vmatprep.subr.mxu0 0.0
      %536 = vmatpush2.msra.mxu0 0.0
      %537 = vmatprep.subr.mxu0 0.0
      %538 = vmatpush2.msra.mxu0 0.0
      %539 = vmatprep.subr.mxu0 0.0
      %540 = vmatpush2.msra.mxu0 0.0
      %541 = vmatprep.subr.mxu0 0.0
      %542 = vmatpush2.msra.mxu0 0.0
      %543 = vmatprep.subr.mxu0 0.0
      %544 = vmatpush2.msra.mxu0 0.0
      %545 = vmatprep.subr.mxu0 0.0
      %546 = vmatpush2.msra.mxu0 0.0
      %547 = vmatprep.subr.mxu0 0.0
      %548 = vmatpush2.msra.mxu0 0.0
      %549 = vmatprep.subr.mxu0 0.0
      %550 = vmatpush2.msra.mxu0 0.0
      %551 = vmatprep.mubr.f32.mxu0 0.0
      %552 = vmatmul.mubr.f32.gmra.mxu0 %v461
      %v553 = vpop.f32.mrf.mxu0
      %v554 = vadd.f32 0.0, %v553
      %v555 = vpop.f32.mrf.mxu0
      %v556 = vadd.f32 0.0, %v555
      %557 = vmatprep.mubr.f32.mxu0 0.0
      %558 = vmatmul.mubr.f32.gmra.mxu0 %v464
      %v559 = vpop.f32.mrf.mxu0
      %v560 = vadd.f32 0.0, %v559
      %v561 = vpop.f32.mrf.mxu0
      %v562 = vadd.f32 0.0, %v561
      %563 = vmatprep.mubr.f32.mxu0 0.0
      %564 = vmatmul.mubr.f32.gmra.mxu0 %v467
      %v565 = vpop.f32.mrf.mxu0
      %v566 = vadd.f32 0.0, %v565
      %v567 = vpop.f32.mrf.mxu0
      %v568 = vadd.f32 0.0, %v567
      %569 = vmatprep.mubr.f32.mxu0 0.0
      %570 = vmatmul.mubr.f32.gmra.mxu0 %v470
      %v571 = vpop.f32.mrf.mxu0
      %v572 = vadd.f32 0.0, %v571
      %v573 = vpop.f32.mrf.mxu0
      %v574 = vadd.f32 0.0, %v573
      %575 = vmatprep.mubr.f32.mxu0 0.0
      %576 = vmatmul.mubr.f32.gmra.mxu0 %v473
      %v577 = vpop.f32.mrf.mxu0
      %v578 = vadd.f32 0.0, %v577
      %v579 = vpop.f32.mrf.mxu0
      %v580 = vadd.f32 0.0, %v579
      %581 = vmatprep.mubr.f32.mxu0 0.0
      %582 = vmatmul.mubr.f32.gmra.mxu0 %v476
      %v583 = vpop.f32.mrf.mxu0
      %v584 = vadd.f32 0.0, %v583
      %v585 = vpop.f32.mrf.mxu0
      %v586 = vadd.f32 0.0, %v585
      %587 = vmatprep.mubr.f32.mxu0 0.0
      %588 = vmatmul.mubr.f32.gmra.mxu0 %v479
      %v589 = vpop.f32.mrf.mxu0
      %v590 = vadd.f32 0.0, %v589
      %v591 = vpop.f32.mrf.mxu0
      %v592 = vadd.f32 0.0, %v591
      %593 = vmatprep.mubr.f32.mxu0 0.0
      %594 = vmatmul.mubr.f32.gmra.mxu0 %v482
      %v595 = vpop.f32.mrf.mxu0
      %v596 = vadd.f32 0.0, %v595
      %v597 = vpop.f32.mrf.mxu0
      %v598 = vadd.f32 0.0, %v597
      %599 = vmatprep.mubr.f32.mxu0 0.0
      %600 = vmatmul.mubr.f32.gmra.mxu0 %v485
      %v601 = vpop.f32.mrf.mxu0
      %v602 = vadd.f32 0.0, %v601
      %v603 = vpop.f32.mrf.mxu0
      %v604 = vadd.f32 0.0, %v603
      %605 = vdwg.mxu0
      %606 = vst [vmem:[#allocation2 + $0x8] sm:$0xff] %v554
      %607 = vst [vmem:[#allocation2 + $0x10] sm:$0xff] %v556
      %608 = vst [vmem:[#allocation2 + $0x28] sm:$0xff] %v560
      %609 = vst [vmem:[#allocation2 + $0x30] sm:$0xff] %v562
      %610 = vst [vmem:[#allocation2 + $0x48] sm:$0xff] %v566
      %611 = vst [vmem:[#allocation2 + $0x50] sm:$0xff] %v568
      %612 = vst [vmem:[#allocation2 + $0x68] sm:$0xff] %v572
      %613 = vst [vmem:[#allocation2 + $0x70] sm:$0xff] %v574
      %614 = vst [vmem:[#allocation2 + $0x88] sm:$0xff] %v578
      %615 = vst [vmem:[#allocation2 + $0x90] sm:$0xff] %v580
      %616 = vst [vmem:[#allocation2 + $0xa8] sm:$0xff] %v584
      %617 = vst [vmem:[#allocation2 + $0xb0] sm:$0xff] %v586
      %618 = vst [vmem:[#allocation2 + $0xc8] sm:$0xff] %v590
      %619 = vst [vmem:[#allocation2 + $0xd0] sm:$0xff] %v592
      %620 = vst [vmem:[#allocation2 + $0xe8] sm:$0xff] %v596
      %621 = vst [vmem:[#allocation2 + $0xf0] sm:$0xff] %v598
      %622 = vst [vmem:[#allocation2 + $0x108] sm:$0xff] %v602
      %623 = vst [vmem:[#allocation2 + $0x110] sm:$0xff] %v604
      %v624 = vld [vmem:[#allocation2] sm:$0xff]
      %v625 = vld [vmem:[#allocation2 + $0x8] sm:$0xff]
      %v626 = vld [vmem:[#allocation2 + $0x10] sm:$0xff]
      %v627 = vsel %vm198, 1, 0
      %v628 = vsel %vm199, 1, 0
      %vm629 = vcmp.eq.s32.totalorder %v627, 1
      %vm630 = vcmp.eq.s32.totalorder %v628, 1
      %634 = vrot.lane.b32.xlu0 %v624, 17
      %v635 = vpop.permute.xlu0 %634
      %636 = vrot.lane.b32.xlu0 %v625, 17
      %v637 = vpop.permute.xlu0 %636
      %638 = vrot.lane.b32.xlu0 %v626, 17
      %v639 = vpop.permute.xlu0 %638
      %v640 = vsel %vm212, %v635, %v637
      %v641 = vsel %vm212, %v637, %v639
      %v644 = vsel %vm629, %v640, 0.0
      %v645 = vsel %vm630, %v641, 0.0
      %v646 = vadd.f32 %v644, 0.0
      %v647 = vadd.f32 %v645, 0.0
      %v648 = vld [vmem:[#allocation2 + $0x20] sm:$0xff]
      %v649 = vld [vmem:[#allocation2 + $0x28] sm:$0xff]
      %v650 = vld [vmem:[#allocation2 + $0x30] sm:$0xff]
      %654 = vrot.lane.b32.xlu0 %v648, 16
      %v655 = vpop.permute.xlu0 %654
      %656 = vrot.lane.b32.xlu0 %v649, 16
      %v657 = vpop.permute.xlu0 %656
      %658 = vrot.lane.b32.xlu0 %v650, 16
      %v659 = vpop.permute.xlu0 %658
      %vm660 = vcmask 130048
      %v661 = vsel %vm660, %v655, %v657
      %v662 = vsel %vm660, %v657, %v659
      %v665 = vadd.f32 %v646, %v661
      %v666 = vadd.f32 %v647, %v662
      %v667 = vld [vmem:[#allocation2 + $0x40] sm:$0xff]
      %v668 = vld [vmem:[#allocation2 + $0x48] sm:$0xff]
      %v669 = vld [vmem:[#allocation2 + $0x50] sm:$0xff]
      %v670 = vsel %vm200, 1, 0
      %v671 = vsel %vm201, 1, 0
      %vm672 = vcmp.eq.s32.totalorder %v670, 1
      %vm673 = vcmp.eq.s32.totalorder %v671, 1
      %677 = vrot.lane.b32.xlu0 %v667, 15
      %v678 = vpop.permute.xlu0 %677
      %679 = vrot.lane.b32.xlu0 %v668, 15
      %v680 = vpop.permute.xlu0 %679
      %681 = vrot.lane.b32.xlu0 %v669, 15
      %v682 = vpop.permute.xlu0 %681
      %vm683 = vcmask 121856
      %v684 = vsel %vm683, %v678, %v680
      %v685 = vsel %vm683, %v680, %v682
      %v688 = vsel %vm672, %v684, 0.0
      %v689 = vsel %vm673, %v685, 0.0
      %v690 = vadd.f32 %v665, %v688
      %v691 = vadd.f32 %v666, %v689
      %v692 = vld [vmem:[#allocation2 + $0x60] sm:$0xff]
      %v693 = vld [vmem:[#allocation2 + $0x68] sm:$0xff]
      %v694 = vld [vmem:[#allocation2 + $0x70] sm:$0xff]
      %698 = vrot.lane.b32.xlu0 %v692, 1
      %v699 = vpop.permute.xlu0 %698
      %700 = vrot.lane.b32.xlu0 %v693, 1
      %v701 = vpop.permute.xlu0 %700
      %702 = vrot.lane.b32.xlu0 %v694, 1
      %v703 = vpop.permute.xlu0 %702
      %vm704 = vcmask 7168
      %v705 = vsel %vm704, %v699, %v701
      %v706 = vsel %vm704, %v701, %v703
      %v709 = vsel %vm629, %v705, 0.0
      %v710 = vsel %vm630, %v706, 0.0
      %v711 = vadd.f32 %v690, %v709
      %v712 = vadd.f32 %v691, %v710
      %v713 = vld [vmem:[#allocation2 + $0x88] sm:$0xff]
      %v714 = vld [vmem:[#allocation2 + $0x90] sm:$0xff]
      %v715 = vadd.f32 %v711, %v713
      %v716 = vadd.f32 %v712, %v714
      %v717 = vld [vmem:[#allocation2 + $0xa8] sm:$0xff]
      %v718 = vld [vmem:[#allocation2 + $0xb0] sm:$0xff]
      %v719 = vld [vmem:[#allocation2 + $0xb8] sm:$0xff]
      %723 = vrot.lane.b32.xlu0 %v717, 127
      %v724 = vpop.permute.xlu0 %723
      %725 = vrot.lane.b32.xlu0 %v718, 127
      %v726 = vpop.permute.xlu0 %725
      %727 = vrot.lane.b32.xlu0 %v719, 127
      %v728 = vpop.permute.xlu0 %727
      %vm729 = vcmask 1039360
      %v730 = vsel %vm729, %v724, %v726
      %v731 = vsel %vm729, %v726, %v728
      %v734 = vsel %vm672, %v730, 0.0
      %v735 = vsel %vm673, %v731, 0.0
      %v736 = vadd.f32 %v715, %v734
      %v737 = vadd.f32 %v716, %v735
      %v738 = vld [vmem:[#allocation2 + $0xc8] sm:$0xff]
      %v739 = vld [vmem:[#allocation2 + $0xd0] sm:$0xff]
      %v740 = vld [vmem:[#allocation2 + $0xd8] sm:$0xff]
      %744 = vrot.lane.b32.xlu0 %v738, 113
      %v745 = vpop.permute.xlu0 %744
      %746 = vrot.lane.b32.xlu0 %v739, 113
      %v747 = vpop.permute.xlu0 %746
      %748 = vrot.lane.b32.xlu0 %v740, 113
      %v749 = vpop.permute.xlu0 %748
      %vm750 = vcmask 924672
      %v751 = vsel %vm750, %v745, %v747
      %v752 = vsel %vm750, %v747, %v749
      %v755 = vsel %vm629, %v751, 0.0
      %v756 = vsel %vm630, %v752, 0.0
      %v757 = vadd.f32 %v736, %v755
      %v758 = vadd.f32 %v737, %v756
      %v759 = vld [vmem:[#allocation2 + $0xe8] sm:$0xff]
      %v760 = vld [vmem:[#allocation2 + $0xf0] sm:$0xff]
      %v761 = vld [vmem:[#allocation2 + $0xf8] sm:$0xff]
      %765 = vrot.lane.b32.xlu0 %v759, 112
      %v766 = vpop.permute.xlu0 %765
      %767 = vrot.lane.b32.xlu0 %v760, 112
      %v768 = vpop.permute.xlu0 %767
      %769 = vrot.lane.b32.xlu0 %v761, 112
      %v770 = vpop.permute.xlu0 %769
      %vm771 = vcmask 916480
      %v772 = vsel %vm771, %v766, %v768
      %v773 = vsel %vm771, %v768, %v770
      %v776 = vadd.f32 %v757, %v772
      %v777 = vadd.f32 %v758, %v773
      %v778 = vld [vmem:[#allocation2 + $0x108] sm:$0xff]
      %v779 = vld [vmem:[#allocation2 + $0x110] sm:$0xff]
      %v780 = vld [vmem:[#allocation2 + $0x118] sm:$0xff]
      %784 = vrot.lane.b32.xlu0 %v778, 111
      %v785 = vpop.permute.xlu0 %784
      %786 = vrot.lane.b32.xlu0 %v779, 111
      %v787 = vpop.permute.xlu0 %786
      %788 = vrot.lane.b32.xlu0 %v780, 111
      %v789 = vpop.permute.xlu0 %788
      %vm790 = vcmask 908288
      %v791 = vsel %vm790, %v785, %v787
      %v792 = vsel %vm790, %v787, %v789
      %v795 = vsel %vm672, %v791, 0.0
      %v796 = vsel %vm673, %v792, 0.0
      %v797 = vadd.f32 %v776, %v795
      %v798 = vadd.f32 %v777, %v796
      %799 = vst [vmem:[%s170] sm:$0xf] %v235
      %800 = vst [vmem:[%s170 + $0x8] sm:$0xf] %v237
      %v803 = vrot.slane %v797, 4
      %v804 = vrot.slane %v798, 4
      %807 = vst [vmem:[%s170] sm:$0xf0] %v803
      %808 = vst [vmem:[%s170 + $0x8] sm:$0xf0] %v804
      %809 = vst [vmem:[%s170 + $0x10] sm:$0xf] %v803
      %810 = vst [vmem:[%s170 + $0x18] sm:$0xf] %v804
      %p811 = scmp.lt.s32.totalorder %s14, 1
      %s812 = scalar_select %p811, %s14, 1
      %s813 = smul.addr %s812, 4
      %s814 = smul.addr %s813, 8
      %s815 = scalar_lea.vmem %s3, %s814
      // Predicated region
      $region33: #{tpu_custom_call.1} parent=31 // pred_check
        %p816 = pneg %p100
      $region34: #{tpu_custom_call.1} parent=31 // pred_check_branch
        %818 = sbr.rel (%p816) target = $region36
      $region35: #{tpu_custom_call.1} parent=31 // pred_region
        _
      $region36: #{tpu_custom_call.1} parent=31 // pred_fallthru
        _
    $region32: #{tpu_custom_call.1} parent=5 // pred_fallthru
      _
    %p819 = scmp.le.s32.totalorder 2, %s9
    // Predicated region
    $region37: #{tpu_custom_call.1} parent=5 // pred_check
      %p820 = pneg %p819
    $region38: #{tpu_custom_call.1} parent=5 // pred_check_branch
      %822 = sbr.rel (%p820) target = $region40
    $region39: #{tpu_custom_call.1} parent=5 // pred_region
      %s823 = ssub.s32 %s9, 2
      // Predicated region
      $region41: #{tpu_custom_call.1} parent=39 // pred_check
        %p824 = pneg %p106
      $region42: #{tpu_custom_call.1} parent=39 // pred_check_branch
        %826 = sbr.rel (%p824) target = $region44
      $region43: #{tpu_custom_call.1} parent=39 // pred_region
        %p827 = scmp.lt.s32.totalorder %s15, 1
        %s828 = scalar_select %p827, %s15, 1
        %s829 = smul.addr %s828, 4
        %s830 = smul.addr %s829, 8
        %s831 = scalar_lea.vmem %s3, %s830
      $region44: #{tpu_custom_call.1} parent=39 // pred_fallthru
        _
    $region40: #{tpu_custom_call.1} parent=5 // pred_fallthru
      _
  $region6: #{tpu_custom_call.1} parent=0 // loop_footer
    %s13 = sadd.s32 1, %s9
  $region7: #{tpu_custom_call.1} parent=0 // loop_footer_branch
    %8 = sbr.rel target = $region3
  $region8: #{tpu_custom_call.1} parent=0 // loop_exit
    _

</llo_original>
